<compile_context>
chip_gen: v5e
topology: v5e:2x2
jax: 0.10.0
libtpu: 0.0.40
codegen_flags: <defaults>
</compile_context>

<pallas_src>
import functools

import jax
import jax.numpy as jnp
from jax.experimental import pallas as pl
from jax.experimental.pallas import tpu as pltpu

_HIGHEST = jax.lax.Precision.HIGHEST


def _gat_fused_kernel(x_ref, xt_ref, bias_ref, waug_ref, a2t_ref, s1t_ref, sf_ref,
                      out_ref, *, alpha, nheads, nhid, out_pad):
    """All heads of the GAT layer for the full (small) graph in one shot."""
    n = x_ref.shape[0]
    hf = nheads * nhid          # concatenated feature width
    hn = nheads * n             # lane-stacked score width

    x = x_ref[...]              # [N, nfeat]
    xt = xt_ref[...]            # [nfeat, N]
    bias = bias_ref[...]        # [N, N]   additive mask (0 on edges/self-loops, -9e15 else)
    waug = waug_ref[...]        # [nfeat, HF + HN]  = [W_flat | (W@a1)@S1]
    a2t = a2t_ref[...]          # [H, nfeat]        = (W@a2)^T
    s1t = s1t_ref[...]          # [HN, H]  block-ones (per-head row-sum selector)
    sf = sf_ref[...]            # [H, HF]  block-ones (per-head feature selector)

    # --- one fused projection on the MXU: Wh for all heads + expanded f1 logits ---
    y = jnp.dot(x, waug, preferred_element_type=jnp.float32, precision=_HIGHEST)
    wh_all = y[:, :hf]          # [N, HF]   wh_all[:, h*F:(h+1)*F] = x @ W_h
    e1 = y[:, hf:]              # [N, HN]   e1[i, h*N+j] = a1_h . Wh_h[i]   (constant over j)

    # --- f2 logits for every head in ROW layout (one tiny MXU matmul, no transposes) ---
    f2_rows = jnp.dot(a2t, xt, preferred_element_type=jnp.float32,
                      precision=_HIGHEST)                          # [H, N], f2_rows[h, j]=a2_h.Wh_h[j]

    # e2[i, h*N+j] = f2_rows[h, j]   (cheap sublane broadcasts, concat along lanes)
    e2 = jnp.concatenate(
        [jnp.broadcast_to(f2_rows[h:h + 1, :], (n, n)) for h in range(nheads)], axis=1)

    # --- attention scores, one pass over the head-stacked [N, H*N] slab ---
    e = e1 + e2
    e = jnp.maximum(e, alpha * e)                                  # LeakyReLU (0 < alpha < 1)
    bias_all = jnp.concatenate([bias] * nheads, axis=1)            # replicate mask across heads
    masked = e + bias_all

    # Row-wise softmax per head block.  A single per-row max (over all heads) is a
    # valid shift: softmax is shift-invariant per block and all exponents stay <= 0.
    m = jnp.max(masked, axis=1, keepdims=True)
    p = jnp.exp(masked - m)                                        # [N, HN]

    # Per-head denominators on the MXU (block-diagonal ones), exact reciprocal.
    denom = jnp.dot(p, s1t, preferred_element_type=jnp.float32,
                    precision=_HIGHEST)                            # [N, H]
    inv = 1.0 / denom                                              # tiny [N, H], exact

    # --- block-diagonal aggregation: all heads in ONE [N,HN] @ [HN,HF] matmul ---
    wblk = jnp.concatenate([wh_all * sf[h:h + 1, :] for h in range(nheads)], axis=0)  # [HN, HF]
    agg = jnp.dot(p, wblk, preferred_element_type=jnp.float32, precision=_HIGHEST)    # [N, HF]

    # Normalize after aggregation (linear in p): expand 1/denom to feature lanes on the MXU.
    inv_exp = jnp.dot(inv, sf, preferred_element_type=jnp.float32, precision=_HIGHEST)
    hprime = agg * inv_exp

    # ELU (concat=True in each GraphAttentionLayer).  exp(min(h,0))-1 is overflow-safe.
    elu = jnp.where(hprime > 0, hprime, jnp.exp(jnp.minimum(hprime, 0.0)) - 1.0)

    # Lane-dense store: pad the feature dim to a multiple of 128 (sliced off outside).
    if out_pad:
        elu = jnp.concatenate([elu, jnp.zeros((n, out_pad), jnp.float32)], axis=1)
    out_ref[...] = elu


def gat_forward(x, edge_index, W, a, alpha):
    """Multi-head GAT forward (eval mode): concat over heads along the feature dim."""
    n, nfeat = x.shape
    nheads, _, nhid = W.shape
    hf = nheads * nhid
    hn = nheads * n

    # Glue: dense adjacency -> additive softmax bias (shared by all heads).
    src, dst = edge_index[0], edge_index[1]
    adj = jnp.zeros((n, n), jnp.float32).at[src, dst].set(1.0)
    adj = jnp.maximum(adj, jnp.eye(n, dtype=jnp.float32))          # self-loops
    bias = jnp.where(adj > 0, 0.0, -9e15).astype(jnp.float32)

    # Glue: fused projection weights and folded a1-logit expansion.
    w_flat = jnp.transpose(W, (1, 0, 2)).reshape(nfeat, hf)        # [nfeat, H*F]
    wa1 = jnp.einsum('hkf,hf->kh', W, a[:, 0, :], precision=_HIGHEST)   # [nfeat, H]
    wa2 = jnp.einsum('hkf,hf->kh', W, a[:, 1, :], precision=_HIGHEST)   # [nfeat, H]

    eye_h = jnp.eye(nheads, dtype=jnp.float32)
    s1 = jnp.repeat(eye_h, n, axis=1)                              # [H, HN]   s1[h, h*N+j] = 1
    s1t = s1.T                                                     # [HN, H]
    sf = jnp.repeat(eye_h, nhid, axis=1)                           # [H, HF]   sf[h, h*F+f] = 1

    # Fold f1 expansion into the single projection matmul: E1 = x @ ((W@a1) @ S1).
    w_aug = jnp.concatenate(
        [w_flat, jnp.dot(wa1, s1, precision=_HIGHEST)], axis=1)    # [nfeat, HF + HN]
    a2t = wa2.T                                                    # [H, nfeat]
    xt = x.T                                                       # [nfeat, N]

    out_pad = (-hf) % 128                                          # lane-dense output width
    kernel = functools.partial(_gat_fused_kernel, alpha=alpha, nheads=nheads,
                               nhid=nhid, out_pad=out_pad)

    flops = 2 * (n * nfeat * (hf + hn) + nheads * nfeat * n + n * hn * nheads
                 + n * hn * hf + n * nheads * hf)
    transcendentals = n * hn + n * hf
    bytes_accessed = 4 * (x.size + xt.size + bias.size + w_aug.size + a2t.size
                          + s1t.size + sf.size + n * (hf + out_pad))

    # Gridless single invocation: all operands fit comfortably in VMEM at these sizes.
    # (When tiling/batching is added later, mark the grid axes "parallel" for megacore.)
    out = pl.pallas_call(
        kernel,
        out_shape=jax.ShapeDtypeStruct((n, hf + out_pad), jnp.float32),
        in_specs=[pl.BlockSpec(memory_space=pltpu.MemorySpace.VMEM) for _ in range(7)],
        out_specs=pl.BlockSpec(memory_space=pltpu.MemorySpace.VMEM),
        cost_estimate=pl.CostEstimate(flops=flops, transcendentals=transcendentals,
                                      bytes_accessed=bytes_accessed),
    )(x, xt, bias, w_aug, a2t, s1t, sf)
    return out[:, :hf]


def _reference(x, edge_index, W, a, alpha):
    """Pure-JAX reference mirroring the PyTorch module (eval mode), full f32 matmuls."""
    n = x.shape[0]
    src, dst = edge_index[0], edge_index[1]
    adj = jnp.zeros((n, n), jnp.float32).at[src, dst].set(1.0)
    adj = jnp.maximum(adj, jnp.eye(n, dtype=jnp.float32))
    outs = []
    for h in range(W.shape[0]):
        wh = jnp.dot(x, W[h], precision=_HIGHEST)
        f1 = jnp.dot(wh, a[h, 0][:, None], precision=_HIGHEST)
        f2 = jnp.dot(wh, a[h, 1][:, None], precision=_HIGHEST)
        e = jax.nn.leaky_relu(f1 + f2.T, alpha)
        masked = jnp.where(adj > 0, e, -9e15)
        attn = jax.nn.softmax(masked, axis=1)
        hp = jnp.dot(attn, wh, precision=_HIGHEST)
        outs.append(jax.nn.elu(hp))
    return jnp.concatenate(outs, axis=1)


if __name__ == "__main__":
    key = jax.random.PRNGKey(0)
    k_x, k_w, k_a, k_e = jax.random.split(key, 4)

    # Small shapes: N nodes, nfeat input features, nhid hidden per head, nheads heads.
    N, NFEAT, NHID, NHEADS = 16, 32, 16, 4
    ALPHA = 0.2  # LeakyReLU slope
    E = 32       # number of directed edges

    x = jax.random.normal(k_x, (N, NFEAT), dtype=jnp.float32)
    W = jax.random.uniform(k_w, (NHEADS, NFEAT, NHID), jnp.float32,
                           minval=-1.0, maxval=1.0) * (6.0 / (NFEAT + NHID)) ** 0.5
    a = jax.random.uniform(k_a, (NHEADS, 2, NHID), jnp.float32,
                           minval=-1.0, maxval=1.0) * (6.0 / (2 * NHID + 1)) ** 0.5
    edge_index = jax.random.randint(k_e, (2, E), 0, N, dtype=jnp.int32)

    out = gat_forward(x, edge_index, W, a, ALPHA)
    out = jax.block_until_ready(out)

    ref = _reference(x, edge_index, W, a, ALPHA)
    assert out.shape == (N, NHEADS * NHID)
    assert jnp.allclose(out, ref, atol=2e-3, rtol=2e-3), "mismatch vs reference"

    print("KERNEL_OK")
</pallas_src>

<mosaic_0001>
module attributes {stable_mosaic.version = 11 : i64} {
  func.func @_gat_fused_kernel(%arg0: memref<16x32xf32, #tpu.memory_space<vmem>>, %arg1: memref<32x16xf32, #tpu.memory_space<vmem>>, %arg2: memref<16x16xf32, #tpu.memory_space<vmem>>, %arg3: memref<32x128xf32, #tpu.memory_space<vmem>>, %arg4: memref<4x32xf32, #tpu.memory_space<vmem>>, %arg5: memref<64x4xf32, #tpu.memory_space<vmem>>, %arg6: memref<4x64xf32, #tpu.memory_space<vmem>>, %arg7: memref<16x128xf32, #tpu.memory_space<vmem>>) attributes {dimension_semantics = [], scalar_prefetch = 0 : i64, scratch_operands = 0 : i64, tpu.core_type = #tpu.core_type<tc>} {
    %c0 = arith.constant 0 : index
    %c0_0 = arith.constant 0 : index
    %0 = vector.load %arg0[%c0, %c0_0] : memref<16x32xf32, #tpu.memory_space<vmem>>, vector<16x32xf32>
    %c0_1 = arith.constant 0 : index
    %c0_2 = arith.constant 0 : index
    %1 = vector.load %arg1[%c0_1, %c0_2] : memref<32x16xf32, #tpu.memory_space<vmem>>, vector<32x16xf32>
    %c0_3 = arith.constant 0 : index
    %c0_4 = arith.constant 0 : index
    %2 = vector.load %arg2[%c0_3, %c0_4] : memref<16x16xf32, #tpu.memory_space<vmem>>, vector<16x16xf32>
    %c0_5 = arith.constant 0 : index
    %c0_6 = arith.constant 0 : index
    %3 = vector.load %arg3[%c0_5, %c0_6] : memref<32x128xf32, #tpu.memory_space<vmem>>, vector<32x128xf32>
    %c0_7 = arith.constant 0 : index
    %c0_8 = arith.constant 0 : index
    %4 = vector.load %arg4[%c0_7, %c0_8] : memref<4x32xf32, #tpu.memory_space<vmem>>, vector<4x32xf32>
    %c0_9 = arith.constant 0 : index
    %c0_10 = arith.constant 0 : index
    %5 = vector.load %arg5[%c0_9, %c0_10] : memref<64x4xf32, #tpu.memory_space<vmem>>, vector<64x4xf32>
    %c0_11 = arith.constant 0 : index
    %c0_12 = arith.constant 0 : index
    %6 = vector.load %arg6[%c0_11, %c0_12] : memref<4x64xf32, #tpu.memory_space<vmem>>, vector<4x64xf32>
    %cst = arith.constant dense<0.000000e+00> : vector<16x128xf32>
    %7 = tpu.matmul %0, %3, %cst {dimension_numbers = #tpu.dot_dimension_numbers<[1], [0], [0], [1], [0, 0, 1, 1], [], []>, precision = #tpu.contract_precision<fp32>} : vector<16x32xf32>, vector<32x128xf32>, vector<16x128xf32> -> vector<16x128xf32>
    %8 = vector.extract_strided_slice %7 {offsets = [0, 0], sizes = [16, 64], strides = [1, 1]} : vector<16x128xf32> to vector<16x64xf32>
    %9 = vector.extract_strided_slice %7 {offsets = [0, 64], sizes = [16, 64], strides = [1, 1]} : vector<16x128xf32> to vector<16x64xf32>
    %cst_13 = arith.constant dense<0.000000e+00> : vector<4x16xf32>
    %10 = tpu.matmul %4, %1, %cst_13 {dimension_numbers = #tpu.dot_dimension_numbers<[1], [0], [0], [1], [0, 0, 1, 1], [], []>, precision = #tpu.contract_precision<fp32>} : vector<4x32xf32>, vector<32x16xf32>, vector<4x16xf32> -> vector<4x16xf32>
    %11 = vector.extract_strided_slice %10 {offsets = [0, 0], sizes = [1, 16], strides = [1, 1]} : vector<4x16xf32> to vector<1x16xf32>
    %12 = vector.shape_cast %11 : vector<1x16xf32> to vector<1x16xf32>
    %13 = vector.broadcast %12 : vector<1x16xf32> to vector<16x16xf32>
    %14 = vector.extract_strided_slice %10 {offsets = [1, 0], sizes = [1, 16], strides = [1, 1]} : vector<4x16xf32> to vector<1x16xf32>
    %15 = vector.shape_cast %14 : vector<1x16xf32> to vector<1x16xf32>
    %16 = vector.broadcast %15 : vector<1x16xf32> to vector<16x16xf32>
    %17 = vector.extract_strided_slice %10 {offsets = [2, 0], sizes = [1, 16], strides = [1, 1]} : vector<4x16xf32> to vector<1x16xf32>
    %18 = vector.shape_cast %17 : vector<1x16xf32> to vector<1x16xf32>
    %19 = vector.broadcast %18 : vector<1x16xf32> to vector<16x16xf32>
    %20 = vector.extract_strided_slice %10 {offsets = [3, 0], sizes = [1, 16], strides = [1, 1]} : vector<4x16xf32> to vector<1x16xf32>
    %21 = vector.shape_cast %20 : vector<1x16xf32> to vector<1x16xf32>
    %22 = vector.broadcast %21 : vector<1x16xf32> to vector<16x16xf32>
    %23 = tpu.concatenate %13, %16, %19, %22 in 1 : vector<16x16xf32>, vector<16x16xf32>, vector<16x16xf32>, vector<16x16xf32> -> vector<16x64xf32>
    %24 = arith.addf %9, %23 : vector<16x64xf32>
    %cst_14 = arith.constant 2.000000e-01 : f32
    %25 = vector.broadcast %cst_14 : f32 to vector<16x64xf32>
    %26 = arith.mulf %25, %24 : vector<16x64xf32>
    %27 = arith.maximumf %24, %26 : vector<16x64xf32>
    %28 = tpu.concatenate %2, %2, %2, %2 in 1 : vector<16x16xf32>, vector<16x16xf32>, vector<16x16xf32>, vector<16x16xf32> -> vector<16x64xf32>
    %29 = arith.addf %27, %28 : vector<16x64xf32>
    %cst_15 = arith.constant dense<0xFF800000> : vector<16xf32>
    %30 = vector.multi_reduction <maximumf>, %29, %cst_15 [1] : vector<16x64xf32> to vector<16xf32>
    %31 = vector.shape_cast %30 : vector<16xf32> to vector<16x1xf32>
    %32 = vector.broadcast %31 : vector<16x1xf32> to vector<16x64xf32>
    %33 = arith.subf %29, %32 : vector<16x64xf32>
    %34 = math.exp %33 : vector<16x64xf32>
    %cst_16 = arith.constant dense<0.000000e+00> : vector<16x4xf32>
    %35 = tpu.matmul %34, %5, %cst_16 {dimension_numbers = #tpu.dot_dimension_numbers<[1], [0], [0], [1], [0, 0, 1, 1], [], []>, precision = #tpu.contract_precision<fp32>} : vector<16x64xf32>, vector<64x4xf32>, vector<16x4xf32> -> vector<16x4xf32>
    %cst_17 = arith.constant 1.000000e+00 : f32
    %36 = vector.broadcast %cst_17 : f32 to vector<16x4xf32>
    %37 = arith.divf %36, %35 : vector<16x4xf32>
    %38 = vector.extract_strided_slice %6 {offsets = [0, 0], sizes = [1, 64], strides = [1, 1]} : vector<4x64xf32> to vector<1x64xf32>
    %39 = vector.broadcast %38 : vector<1x64xf32> to vector<16x64xf32>
    %40 = arith.mulf %8, %39 : vector<16x64xf32>
    %41 = vector.extract_strided_slice %6 {offsets = [1, 0], sizes = [1, 64], strides = [1, 1]} : vector<4x64xf32> to vector<1x64xf32>
    %42 = vector.broadcast %41 : vector<1x64xf32> to vector<16x64xf32>
    %43 = arith.mulf %8, %42 : vector<16x64xf32>
    %44 = vector.extract_strided_slice %6 {offsets = [2, 0], sizes = [1, 64], strides = [1, 1]} : vector<4x64xf32> to vector<1x64xf32>
    %45 = vector.broadcast %44 : vector<1x64xf32> to vector<16x64xf32>
    %46 = arith.mulf %8, %45 : vector<16x64xf32>
    %47 = vector.extract_strided_slice %6 {offsets = [3, 0], sizes = [1, 64], strides = [1, 1]} : vector<4x64xf32> to vector<1x64xf32>
    %48 = vector.broadcast %47 : vector<1x64xf32> to vector<16x64xf32>
    %49 = arith.mulf %8, %48 : vector<16x64xf32>
    %50 = tpu.concatenate %40, %43, %46, %49 in 0 : vector<16x64xf32>, vector<16x64xf32>, vector<16x64xf32>, vector<16x64xf32> -> vector<64x64xf32>
    %cst_18 = arith.constant dense<0.000000e+00> : vector<16x64xf32>
    %51 = tpu.matmul %34, %50, %cst_18 {dimension_numbers = #tpu.dot_dimension_numbers<[1], [0], [0], [1], [0, 0, 1, 1], [], []>, precision = #tpu.contract_precision<fp32>} : vector<16x64xf32>, vector<64x64xf32>, vector<16x64xf32> -> vector<16x64xf32>
    %cst_19 = arith.constant dense<0.000000e+00> : vector<16x64xf32>
    %52 = tpu.matmul %37, %6, %cst_19 {dimension_numbers = #tpu.dot_dimension_numbers<[1], [0], [0], [1], [0, 0, 1, 1], [], []>, precision = #tpu.contract_precision<fp32>} : vector<16x4xf32>, vector<4x64xf32>, vector<16x64xf32> -> vector<16x64xf32>
    %53 = arith.mulf %51, %52 : vector<16x64xf32>
    %cst_20 = arith.constant 0.000000e+00 : f32
    %54 = vector.broadcast %cst_20 : f32 to vector<16x64xf32>
    %55 = arith.cmpf ogt, %53, %54 : vector<16x64xf32>
    %cst_21 = arith.constant 0.000000e+00 : f32
    %56 = vector.broadcast %cst_21 : f32 to vector<16x64xf32>
    %57 = arith.minimumf %53, %56 : vector<16x64xf32>
    %58 = math.exp %57 : vector<16x64xf32>
    %cst_22 = arith.constant 1.000000e+00 : f32
    %59 = vector.broadcast %cst_22 : f32 to vector<16x64xf32>
    %60 = arith.subf %58, %59 : vector<16x64xf32>
    %61 = arith.select %55, %53, %60 : vector<16x64xi1>, vector<16x64xf32>
    %cst_23 = arith.constant 0.000000e+00 : f32
    %62 = vector.broadcast %cst_23 : f32 to vector<16x64xf32>
    %63 = tpu.concatenate %61, %62 in 1 : vector<16x64xf32>, vector<16x64xf32> -> vector<16x128xf32>
    %c0_24 = arith.constant 0 : index
    %c0_25 = arith.constant 0 : index
    %64 = vector.load %arg7[%c0_24, %c0_25] : memref<16x128xf32, #tpu.memory_space<vmem>>, vector<16x128xf32>
    tpu.vector_store %arg7[%c0_24, %c0_25], %63 {strides = array<i32>} : memref<16x128xf32, #tpu.memory_space<vmem>>, vector<16x128xf32>,
    return
  }
}

</mosaic_0001>

<llo_original>
// kernel: tpu_custom_call.1
$region0: #{tpu_custom_call.1}
  #allocation0 [shape = 'u32[]', space=smem, size = 0x4, offset = 0x4, fixed_abs, tag = 'smem constant byte address 0x4 - core index']
  #allocation1 [shape = 'u32[72,128]{1,0:T(1,128)}', space=vmem, size = 0x9000, scoped, tag = 'internal scratch']
  %s0 = inlined_call_operand.vmem [shape: f32[16,32], index: 0, kind: input, shape index: {}]
  %s1 = inlined_call_operand.vmem [shape: f32[32,16], index: 1, kind: input, shape index: {}]
  %s2 = inlined_call_operand.vmem [shape: f32[16,16], index: 2, kind: input, shape index: {}]
  %s3 = inlined_call_operand.vmem [shape: f32[32,128], index: 3, kind: input, shape index: {}]
  %s4 = inlined_call_operand.vmem [shape: f32[4,32], index: 4, kind: input, shape index: {}]
  %s5 = inlined_call_operand.vmem [shape: f32[64,4], index: 5, kind: input, shape index: {}]
  %s6 = inlined_call_operand.vmem [shape: f32[4,64], index: 6, kind: input, shape index: {}]
  %s7 = inlined_call_operand.hbm [shape: f32[16,128], index: 7, kind: output, shape index: {}]
  %s8 = sld [smem:[#allocation0]]
  $region38: #{tpu_custom_call.1} parent=0
    _
  %s10 = ssub.s32 1, %s8
  %s11 = scalar_select 0, %s10, %s8
  $region1: #{tpu_custom_call.1} parent=0
    #allocation2 [shape = 'u8[8192]{0}', space=vmem, size = 0x2000, scoped, tag = 'output window, operand 0, single buffered']
    #allocation3 [shape = 's32[1]{0}', space=sflag, size = 0x4, scoped, tag = 'scoped memory for tpu_custom_call.1']
    %12 = vsyncpa [#allocation3], 0
    // Predicated region
    $region2: #{tpu_custom_call.1} parent=1 // pred_check
      _
    $region3: #{tpu_custom_call.1} parent=1 // pred_check_branch
      %14 = sbr.rel (0) target = $region5
    $region4: #{tpu_custom_call.1} parent=1 // pred_region
      _
    $region5: #{tpu_custom_call.1} parent=1 // pred_fallthru
      _
    // Predicated region
    $region6: #{tpu_custom_call.1} parent=1 // pred_check
      _
    $region7: #{tpu_custom_call.1} parent=1 // pred_check_branch
      %16 = sbr.rel (0) target = $region9
    $region8: #{tpu_custom_call.1} parent=1 // pred_region
      _
    $region9: #{tpu_custom_call.1} parent=1 // pred_fallthru
      _
    // Predicated region
    $region10: #{tpu_custom_call.1} parent=1 // pred_check
      _
    $region11: #{tpu_custom_call.1} parent=1 // pred_check_branch
      %18 = sbr.rel (0) target = $region13
    $region12: #{tpu_custom_call.1} parent=1 // pred_region
      _
    $region13: #{tpu_custom_call.1} parent=1 // pred_fallthru
      _
    // Predicated region
    $region14: #{tpu_custom_call.1} parent=1 // pred_check
      _
    $region15: #{tpu_custom_call.1} parent=1 // pred_check_branch
      %20 = sbr.rel (0) target = $region17
    $region16: #{tpu_custom_call.1} parent=1 // pred_region
      _
    $region17: #{tpu_custom_call.1} parent=1 // pred_fallthru
      _
    // Predicated region
    $region18: #{tpu_custom_call.1} parent=1 // pred_check
      _
    $region19: #{tpu_custom_call.1} parent=1 // pred_check_branch
      %22 = sbr.rel (0) target = $region21
    $region20: #{tpu_custom_call.1} parent=1 // pred_region
      _
    $region21: #{tpu_custom_call.1} parent=1 // pred_fallthru
      _
    // Predicated region
    $region22: #{tpu_custom_call.1} parent=1 // pred_check
      _
    $region23: #{tpu_custom_call.1} parent=1 // pred_check_branch
      %24 = sbr.rel (0) target = $region25
    $region24: #{tpu_custom_call.1} parent=1 // pred_region
      _
    $region25: #{tpu_custom_call.1} parent=1 // pred_fallthru
      _
    // Predicated region
    $region26: #{tpu_custom_call.1} parent=1 // pred_check
      _
    $region27: #{tpu_custom_call.1} parent=1 // pred_check_branch
      %26 = sbr.rel (0) target = $region29
    $region28: #{tpu_custom_call.1} parent=1 // pred_region
      _
    $region29: #{tpu_custom_call.1} parent=1 // pred_fallthru
      _
    %v27 = vld [vmem:[%s0] sm:$0xff]
    %v28 = vld [vmem:[%s0 + $0x8] sm:$0xff]
    %v29 = vld [vmem:[%s1] sm:$0xff]
    %v30 = vld [vmem:[%s1 + $0x8] sm:$0xff]
    %v31 = vld [vmem:[%s1 + $0x10] sm:$0xff]
    %v32 = vld [vmem:[%s1 + $0x18] sm:$0xff]
    %v33 = vld [vmem:[%s2] sm:$0xff]
    %v34 = vld [vmem:[%s2 + $0x8] sm:$0xff]
    %v35 = vld [vmem:[%s3] sm:$0xff]
    %v36 = vld [vmem:[%s3 + $0x8] sm:$0xff]
    %v37 = vld [vmem:[%s3 + $0x10] sm:$0xff]
    %v38 = vld [vmem:[%s3 + $0x18] sm:$0xff]
    %v39 = vld [vmem:[%s4] sm:$0xf]
    %v40 = vld [vmem:[%s5] sm:$0xff]
    %v41 = vld [vmem:[%s5 + $0x8] sm:$0xff]
    %v42 = vld [vmem:[%s5 + $0x10] sm:$0xff]
    %v43 = vld [vmem:[%s5 + $0x18] sm:$0xff]
    %v44 = vld [vmem:[%s5 + $0x20] sm:$0xff]
    %v45 = vld [vmem:[%s5 + $0x28] sm:$0xff]
    %v46 = vld [vmem:[%s5 + $0x30] sm:$0xff]
    %v47 = vld [vmem:[%s5 + $0x38] sm:$0xff]
    %v48 = vld [vmem:[%s6] sm:$0xf]
    %vm49 = vcmask 261120
    %v51 = vsel %vm49, %v27, 0
    %v54 = vsel %vm49, %v28, 0
    %56 = vmatpush.msra.mxu0 0.0
    %57 = vmatpush.msra.mxu0 0.0
    %58 = vmatpush.msra.mxu0 0.0
    %59 = vmatpush.msra.mxu0 0.0
    %60 = vmatpush.msra.mxu0 0.0
    %61 = vmatpush.msra.mxu0 0.0
    %62 = vmatpush.msra.mxu0 0.0
    %63 = vmatpush.msra.mxu0 0.0
    %64 = vmatpush.msra.mxu0 0.0
    %65 = vmatpush.msra.mxu0 0.0
    %66 = vmatpush.msra.mxu0 0.0
    %67 = vmatpush.msra.mxu0 0.0
    %v68 = vand.u32 %v38, 4294901760
    %69 = vmatpush.msra.mxu0 %v68
    %v70 = vand.u32 %v37, 4294901760
    %71 = vmatpush.msra.mxu0 %v70
    %v72 = vand.u32 %v36, 4294901760
    %73 = vmatpush.msra.mxu0 %v72
    %v74 = vand.u32 %v35, 4294901760
    %75 = vmatpush.msra.mxu0 %v74
    %v76 = vand.u32 %v51, 4294901760
    %v77 = vsub.f32 %v51, %v76
    %v78 = vand.u32 %v77, 4294901760
    %v79 = vsub.f32 %v77, %v78
    %v80 = vand.u32 %v79, 4294901760
    %81 = vmatmul.f32.gmra.mxu0 %v80
    %v82 = vpop.f32.mrf.mxu0
    %v83 = vadd.f32 0.0, %v82
    %v84 = vand.u32 %v54, 4294901760
    %v85 = vsub.f32 %v54, %v84
    %v86 = vand.u32 %v85, 4294901760
    %v87 = vsub.f32 %v85, %v86
    %v88 = vand.u32 %v87, 4294901760
    %89 = vmatmul.f32.gmra.mxu0 %v88
    %v90 = vpop.f32.mrf.mxu0
    %v91 = vadd.f32 0.0, %v90
    %92 = vdwg.mxu0
    %93 = vmatpush.msra.mxu0 0.0
    %94 = vmatpush.msra.mxu0 0.0
    %95 = vmatpush.msra.mxu0 0.0
    %96 = vmatpush.msra.mxu0 0.0
    %97 = vmatpush.msra.mxu0 0.0
    %98 = vmatpush.msra.mxu0 0.0
    %99 = vmatpush.msra.mxu0 0.0
    %100 = vmatpush.msra.mxu0 0.0
    %101 = vmatpush.msra.mxu0 0.0
    %102 = vmatpush.msra.mxu0 0.0
    %103 = vmatpush.msra.mxu0 0.0
    %104 = vmatpush.msra.mxu0 0.0
    %v105 = vand.u32 %v38, 4294901760
    %v106 = vsub.f32 %v38, %v105
    %v107 = vand.u32 %v106, 4294901760
    %v108 = vsub.f32 %v106, %v107
    %v109 = vand.u32 %v108, 4294901760
    %110 = vmatpush.msra.mxu0 %v109
    %v111 = vand.u32 %v37, 4294901760
    %v112 = vsub.f32 %v37, %v111
    %v113 = vand.u32 %v112, 4294901760
    %v114 = vsub.f32 %v112, %v113
    %v115 = vand.u32 %v114, 4294901760
    %116 = vmatpush.msra.mxu0 %v115
    %v117 = vand.u32 %v36, 4294901760
    %v118 = vsub.f32 %v36, %v117
    %v119 = vand.u32 %v118, 4294901760
    %v120 = vsub.f32 %v118, %v119
    %v121 = vand.u32 %v120, 4294901760
    %122 = vmatpush.msra.mxu0 %v121
    %v123 = vand.u32 %v35, 4294901760
    %v124 = vsub.f32 %v35, %v123
    %v125 = vand.u32 %v124, 4294901760
    %v126 = vsub.f32 %v124, %v125
    %v127 = vand.u32 %v126, 4294901760
    %128 = vmatpush.msra.mxu0 %v127
    %v129 = vand.u32 %v51, 4294901760
    %130 = vmatmul.f32.gmra.mxu0 %v129
    %v131 = vpop.f32.mrf.mxu0
    %v132 = vadd.f32 %v83, %v131
    %v133 = vand.u32 %v54, 4294901760
    %134 = vmatmul.f32.gmra.mxu0 %v133
    %v135 = vpop.f32.mrf.mxu0
    %v136 = vadd.f32 %v91, %v135
    %137 = vdwg.mxu0
    %138 = vmatpush.msra.mxu0 0.0
    %139 = vmatpush.msra.mxu0 0.0
    %140 = vmatpush.msra.mxu0 0.0
    %141 = vmatpush.msra.mxu0 0.0
    %142 = vmatpush.msra.mxu0 0.0
    %143 = vmatpush.msra.mxu0 0.0
    %144 = vmatpush.msra.mxu0 0.0
    %145 = vmatpush.msra.mxu0 0.0
    %146 = vmatpush.msra.mxu0 0.0
    %147 = vmatpush.msra.mxu0 0.0
    %148 = vmatpush.msra.mxu0 0.0
    %149 = vmatpush.msra.mxu0 0.0
    %v150 = vand.u32 %v38, 4294901760
    %v151 = vsub.f32 %v38, %v150
    %152 = vmatpush.msra.mxu0 %v151
    %v153 = vand.u32 %v37, 4294901760
    %v154 = vsub.f32 %v37, %v153
    %155 = vmatpush.msra.mxu0 %v154
    %v156 = vand.u32 %v36, 4294901760
    %v157 = vsub.f32 %v36, %v156
    %158 = vmatpush.msra.mxu0 %v157
    %v159 = vand.u32 %v35, 4294901760
    %v160 = vsub.f32 %v35, %v159
    %161 = vmatpush.msra.mxu0 %v160
    %v162 = vand.u32 %v51, 4294901760
    %v163 = vsub.f32 %v51, %v162
    %164 = vmatmul.f32.gmra.mxu0 %v163
    %v165 = vpop.f32.mrf.mxu0
    %v166 = vadd.f32 %v132, %v165
    %v167 = vand.u32 %v54, 4294901760
    %v168 = vsub.f32 %v54, %v167
    %169 = vmatmul.f32.gmra.mxu0 %v168
    %v170 = vpop.f32.mrf.mxu0
    %v171 = vadd.f32 %v136, %v170
    %172 = vdwg.mxu0
    %173 = vmatpush.msra.mxu0 0.0
    %174 = vmatpush.msra.mxu0 0.0
    %175 = vmatpush.msra.mxu0 0.0
    %176 = vmatpush.msra.mxu0 0.0
    %177 = vmatpush.msra.mxu0 0.0
    %178 = vmatpush.msra.mxu0 0.0
    %179 = vmatpush.msra.mxu0 0.0
    %180 = vmatpush.msra.mxu0 0.0
    %181 = vmatpush.msra.mxu0 0.0
    %182 = vmatpush.msra.mxu0 0.0
    %183 = vmatpush.msra.mxu0 0.0
    %184 = vmatpush.msra.mxu0 0.0
    %v185 = vand.u32 %v38, 4294901760
    %186 = vmatpush.msra.mxu0 %v185
    %v187 = vand.u32 %v37, 4294901760
    %188 = vmatpush.msra.mxu0 %v187
    %v189 = vand.u32 %v36, 4294901760
    %190 = vmatpush.msra.mxu0 %v189
    %v191 = vand.u32 %v35, 4294901760
    %192 = vmatpush.msra.mxu0 %v191
    %v193 = vand.u32 %v51, 4294901760
    %v194 = vsub.f32 %v51, %v193
    %v195 = vand.u32 %v194, 4294901760
    %196 = vmatmul.f32.gmra.mxu0 %v195
    %v197 = vpop.f32.mrf.mxu0
    %v198 = vadd.f32 %v166, %v197
    %v199 = vand.u32 %v54, 4294901760
    %v200 = vsub.f32 %v54, %v199
    %v201 = vand.u32 %v200, 4294901760
    %202 = vmatmul.f32.gmra.mxu0 %v201
    %v203 = vpop.f32.mrf.mxu0
    %v204 = vadd.f32 %v171, %v203
    %205 = vdwg.mxu0
    %206 = vmatpush.msra.mxu0 0.0
    %207 = vmatpush.msra.mxu0 0.0
    %208 = vmatpush.msra.mxu0 0.0
    %209 = vmatpush.msra.mxu0 0.0
    %210 = vmatpush.msra.mxu0 0.0
    %211 = vmatpush.msra.mxu0 0.0
    %212 = vmatpush.msra.mxu0 0.0
    %213 = vmatpush.msra.mxu0 0.0
    %214 = vmatpush.msra.mxu0 0.0
    %215 = vmatpush.msra.mxu0 0.0
    %216 = vmatpush.msra.mxu0 0.0
    %217 = vmatpush.msra.mxu0 0.0
    %v218 = vand.u32 %v38, 4294901760
    %v219 = vsub.f32 %v38, %v218
    %v220 = vand.u32 %v219, 4294901760
    %221 = vmatpush.msra.mxu0 %v220
    %v222 = vand.u32 %v37, 4294901760
    %v223 = vsub.f32 %v37, %v222
    %v224 = vand.u32 %v223, 4294901760
    %225 = vmatpush.msra.mxu0 %v224
    %v226 = vand.u32 %v36, 4294901760
    %v227 = vsub.f32 %v36, %v226
    %v228 = vand.u32 %v227, 4294901760
    %229 = vmatpush.msra.mxu0 %v228
    %v230 = vand.u32 %v35, 4294901760
    %v231 = vsub.f32 %v35, %v230
    %v232 = vand.u32 %v231, 4294901760
    %233 = vmatpush.msra.mxu0 %v232
    %v234 = vand.u32 %v51, 4294901760
    %235 = vmatmul.f32.gmra.mxu0 %v234
    %v236 = vpop.f32.mrf.mxu0
    %v237 = vadd.f32 %v198, %v236
    %v238 = vand.u32 %v54, 4294901760
    %239 = vmatmul.f32.gmra.mxu0 %v238
    %v240 = vpop.f32.mrf.mxu0
    %v241 = vadd.f32 %v204, %v240
    %242 = vdwg.mxu0
    %243 = vmatpush.msra.mxu0 0.0
    %244 = vmatpush.msra.mxu0 0.0
    %245 = vmatpush.msra.mxu0 0.0
    %246 = vmatpush.msra.mxu0 0.0
    %247 = vmatpush.msra.mxu0 0.0
    %248 = vmatpush.msra.mxu0 0.0
    %249 = vmatpush.msra.mxu0 0.0
    %250 = vmatpush.msra.mxu0 0.0
    %251 = vmatpush.msra.mxu0 0.0
    %252 = vmatpush.msra.mxu0 0.0
    %253 = vmatpush.msra.mxu0 0.0
    %254 = vmatpush.msra.mxu0 0.0
    %v255 = vand.u32 %v38, 4294901760
    %256 = vmatpush.msra.mxu0 %v255
    %v257 = vand.u32 %v37, 4294901760
    %258 = vmatpush.msra.mxu0 %v257
    %v259 = vand.u32 %v36, 4294901760
    %260 = vmatpush.msra.mxu0 %v259
    %v261 = vand.u32 %v35, 4294901760
    %262 = vmatpush.msra.mxu0 %v261
    %v263 = vand.u32 %v51, 4294901760
    %264 = vmatmul.f32.gmra.mxu0 %v263
    %v265 = vpop.f32.mrf.mxu0
    %v266 = vadd.f32 %v237, %v265
    %v267 = vand.u32 %v54, 4294901760
    %268 = vmatmul.f32.gmra.mxu0 %v267
    %v269 = vpop.f32.mrf.mxu0
    %v270 = vadd.f32 %v241, %v269
    %271 = vdwg.mxu0
    %v273 = vsel %vm49, %v39, 0
    %275 = vmatpush.msra.mxu0 0.0
    %276 = vmatpush.msra.mxu0 0.0
    %277 = vmatpush.msra.mxu0 0.0
    %278 = vmatpush.msra.mxu0 0.0
    %279 = vmatpush.msra.mxu0 0.0
    %280 = vmatpush.msra.mxu0 0.0
    %281 = vmatpush.msra.mxu0 0.0
    %282 = vmatpush.msra.mxu0 0.0
    %283 = vmatpush.msra.mxu0 0.0
    %284 = vmatpush.msra.mxu0 0.0
    %285 = vmatpush.msra.mxu0 0.0
    %286 = vmatpush.msra.mxu0 0.0
    %v287 = vand.u32 %v32, 4294901760
    %288 = vmatpush.msra.mxu0 %v287
    %v289 = vand.u32 %v31, 4294901760
    %290 = vmatpush.msra.mxu0 %v289
    %v291 = vand.u32 %v30, 4294901760
    %292 = vmatpush.msra.mxu0 %v291
    %v293 = vand.u32 %v29, 4294901760
    %294 = vmatpush.msra.mxu0 %v293
    %v295 = vand.u32 %v273, 4294901760
    %v296 = vsub.f32 %v273, %v295
    %v297 = vand.u32 %v296, 4294901760
    %v298 = vsub.f32 %v296, %v297
    %v299 = vand.u32 %v298, 4294901760
    %300 = vmatmul.f32.gmra.mxu0 %v299
    %v301 = vpop.f32.mrf.mxu0
    %v302 = vadd.f32 0.0, %v301
    %303 = vdwg.mxu0
    %304 = vmatpush.msra.mxu0 0.0
    %305 = vmatpush.msra.mxu0 0.0
    %306 = vmatpush.msra.mxu0 0.0
    %307 = vmatpush.msra.mxu0 0.0
    %308 = vmatpush.msra.mxu0 0.0
    %309 = vmatpush.msra.mxu0 0.0
    %310 = vmatpush.msra.mxu0 0.0
    %311 = vmatpush.msra.mxu0 0.0
    %312 = vmatpush.msra.mxu0 0.0
    %313 = vmatpush.msra.mxu0 0.0
    %314 = vmatpush.msra.mxu0 0.0
    %315 = vmatpush.msra.mxu0 0.0
    %v316 = vand.u32 %v32, 4294901760
    %v317 = vsub.f32 %v32, %v316
    %v318 = vand.u32 %v317, 4294901760
    %v319 = vsub.f32 %v317, %v318
    %v320 = vand.u32 %v319, 4294901760
    %321 = vmatpush.msra.mxu0 %v320
    %v322 = vand.u32 %v31, 4294901760
    %v323 = vsub.f32 %v31, %v322
    %v324 = vand.u32 %v323, 4294901760
    %v325 = vsub.f32 %v323, %v324
    %v326 = vand.u32 %v325, 4294901760
    %327 = vmatpush.msra.mxu0 %v326
    %v328 = vand.u32 %v30, 4294901760
    %v329 = vsub.f32 %v30, %v328
    %v330 = vand.u32 %v329, 4294901760
    %v331 = vsub.f32 %v329, %v330
    %v332 = vand.u32 %v331, 4294901760
    %333 = vmatpush.msra.mxu0 %v332
    %v334 = vand.u32 %v29, 4294901760
    %v335 = vsub.f32 %v29, %v334
    %v336 = vand.u32 %v335, 4294901760
    %v337 = vsub.f32 %v335, %v336
    %v338 = vand.u32 %v337, 4294901760
    %339 = vmatpush.msra.mxu0 %v338
    %v340 = vand.u32 %v273, 4294901760
    %341 = vmatmul.f32.gmra.mxu0 %v340
    %v342 = vpop.f32.mrf.mxu0
    %v343 = vadd.f32 %v302, %v342
    %344 = vdwg.mxu0
    %345 = vmatpush.msra.mxu0 0.0
    %346 = vmatpush.msra.mxu0 0.0
    %347 = vmatpush.msra.mxu0 0.0
    %348 = vmatpush.msra.mxu0 0.0
    %349 = vmatpush.msra.mxu0 0.0
    %350 = vmatpush.msra.mxu0 0.0
    %351 = vmatpush.msra.mxu0 0.0
    %352 = vmatpush.msra.mxu0 0.0
    %353 = vmatpush.msra.mxu0 0.0
    %354 = vmatpush.msra.mxu0 0.0
    %355 = vmatpush.msra.mxu0 0.0
    %356 = vmatpush.msra.mxu0 0.0
    %v357 = vand.u32 %v32, 4294901760
    %v358 = vsub.f32 %v32, %v357
    %359 = vmatpush.msra.mxu0 %v358
    %v360 = vand.u32 %v31, 4294901760
    %v361 = vsub.f32 %v31, %v360
    %362 = vmatpush.msra.mxu0 %v361
    %v363 = vand.u32 %v30, 4294901760
    %v364 = vsub.f32 %v30, %v363
    %365 = vmatpush.msra.mxu0 %v364
    %v366 = vand.u32 %v29, 4294901760
    %v367 = vsub.f32 %v29, %v366
    %368 = vmatpush.msra.mxu0 %v367
    %v369 = vand.u32 %v273, 4294901760
    %v370 = vsub.f32 %v273, %v369
    %371 = vmatmul.f32.gmra.mxu0 %v370
    %v372 = vpop.f32.mrf.mxu0
    %v373 = vadd.f32 %v343, %v372
    %374 = vdwg.mxu0
    %375 = vmatpush.msra.mxu0 0.0
    %376 = vmatpush.msra.mxu0 0.0
    %377 = vmatpush.msra.mxu0 0.0
    %378 = vmatpush.msra.mxu0 0.0
    %379 = vmatpush.msra.mxu0 0.0
    %380 = vmatpush.msra.mxu0 0.0
    %381 = vmatpush.msra.mxu0 0.0
    %382 = vmatpush.msra.mxu0 0.0
    %383 = vmatpush.msra.mxu0 0.0
    %384 = vmatpush.msra.mxu0 0.0
    %385 = vmatpush.msra.mxu0 0.0
    %386 = vmatpush.msra.mxu0 0.0
    %v387 = vand.u32 %v32, 4294901760
    %388 = vmatpush.msra.mxu0 %v387
    %v389 = vand.u32 %v31, 4294901760
    %390 = vmatpush.msra.mxu0 %v389
    %v391 = vand.u32 %v30, 4294901760
    %392 = vmatpush.msra.mxu0 %v391
    %v393 = vand.u32 %v29, 4294901760
    %394 = vmatpush.msra.mxu0 %v393
    %v395 = vand.u32 %v273, 4294901760
    %v396 = vsub.f32 %v273, %v395
    %v397 = vand.u32 %v396, 4294901760
    %398 = vmatmul.f32.gmra.mxu0 %v397
    %v399 = vpop.f32.mrf.mxu0
    %v400 = vadd.f32 %v373, %v399
    %401 = vdwg.mxu0
    %402 = vmatpush.msra.mxu0 0.0
    %403 = vmatpush.msra.mxu0 0.0
    %404 = vmatpush.msra.mxu0 0.0
    %405 = vmatpush.msra.mxu0 0.0
    %406 = vmatpush.msra.mxu0 0.0
    %407 = vmatpush.msra.mxu0 0.0
    %408 = vmatpush.msra.mxu0 0.0
    %409 = vmatpush.msra.mxu0 0.0
    %410 = vmatpush.msra.mxu0 0.0
    %411 = vmatpush.msra.mxu0 0.0
    %412 = vmatpush.msra.mxu0 0.0
    %413 = vmatpush.msra.mxu0 0.0
    %v414 = vand.u32 %v32, 4294901760
    %v415 = vsub.f32 %v32, %v414
    %v416 = vand.u32 %v415, 4294901760
    %417 = vmatpush.msra.mxu0 %v416
    %v418 = vand.u32 %v31, 4294901760
    %v419 = vsub.f32 %v31, %v418
    %v420 = vand.u32 %v419, 4294901760
    %421 = vmatpush.msra.mxu0 %v420
    %v422 = vand.u32 %v30, 4294901760
    %v423 = vsub.f32 %v30, %v422
    %v424 = vand.u32 %v423, 4294901760
    %425 = vmatpush.msra.mxu0 %v424
    %v426 = vand.u32 %v29, 4294901760
    %v427 = vsub.f32 %v29, %v426
    %v428 = vand.u32 %v427, 4294901760
    %429 = vmatpush.msra.mxu0 %v428
    %v430 = vand.u32 %v273, 4294901760
    %431 = vmatmul.f32.gmra.mxu0 %v430
    %v432 = vpop.f32.mrf.mxu0
    %v433 = vadd.f32 %v400, %v432
    %434 = vdwg.mxu0
    %435 = vmatpush.msra.mxu0 0.0
    %436 = vmatpush.msra.mxu0 0.0
    %437 = vmatpush.msra.mxu0 0.0
    %438 = vmatpush.msra.mxu0 0.0
    %439 = vmatpush.msra.mxu0 0.0
    %440 = vmatpush.msra.mxu0 0.0
    %441 = vmatpush.msra.mxu0 0.0
    %442 = vmatpush.msra.mxu0 0.0
    %443 = vmatpush.msra.mxu0 0.0
    %444 = vmatpush.msra.mxu0 0.0
    %445 = vmatpush.msra.mxu0 0.0
    %446 = vmatpush.msra.mxu0 0.0
    %v447 = vand.u32 %v32, 4294901760
    %448 = vmatpush.msra.mxu0 %v447
    %v449 = vand.u32 %v31, 4294901760
    %450 = vmatpush.msra.mxu0 %v449
    %v451 = vand.u32 %v30, 4294901760
    %452 = vmatpush.msra.mxu0 %v451
    %v453 = vand.u32 %v29, 4294901760
    %454 = vmatpush.msra.mxu0 %v453
    %v455 = vand.u32 %v273, 4294901760
    %456 = vmatmul.f32.gmra.mxu0 %v455
    %v457 = vpop.f32.mrf.mxu0
    %v458 = vadd.f32 %v433, %v457
    %459 = vdwg.mxu0
    %v460 = vperm.slane %v458, 0
    %v461 = vperm.slane %v458, 1
    %v462 = vperm.slane %v458, 2
    %v463 = vperm.slane %v458, 3
    %465 = vrot.lane.b32.xlu0 %v461, 16
    %v466 = vpop.permute.xlu0 %465
    %469 = vrot.lane.b32.xlu0 %v462, 32
    %v470 = vpop.permute.xlu0 %469
    %473 = vrot.lane.b32.xlu0 %v463, 48
    %v474 = vpop.permute.xlu0 %473
    %vm476 = vcmask 130048
    %v477 = vsel %vm476, %v460, %v466
    %v478 = vsel %vm49, %v477, %v470
    %vm479 = vcmask 392192
    %v480 = vsel %vm479, %v478, %v474
    %482 = vrot.lane.b32.xlu0 %v480, 64
    %v483 = vpop.permute.xlu0 %482
    %v485 = vadd.f32 %v266, %v483
    %v486 = vadd.f32 %v270, %v483
    %v487 = vmul.f32 %v485, 0.2
    %v488 = vmul.f32 %v486, 0.2
    %v489 = vmax.f32 %v485, %v487
    %v490 = vmax.f32 %v486, %v488
    %493 = vrot.lane.b32.xlu0 %v33, 16
    %v494 = vpop.permute.xlu0 %493
    %495 = vrot.lane.b32.xlu0 %v34, 16
    %v496 = vpop.permute.xlu0 %495
    %499 = vrot.lane.b32.xlu0 %v33, 32
    %v500 = vpop.permute.xlu0 %499
    %501 = vrot.lane.b32.xlu0 %v34, 32
    %v502 = vpop.permute.xlu0 %501
    %505 = vrot.lane.b32.xlu0 %v33, 48
    %v506 = vpop.permute.xlu0 %505
    %507 = vrot.lane.b32.xlu0 %v34, 48
    %v508 = vpop.permute.xlu0 %507
    %v511 = vsel %vm476, %v33, %v494
    %v512 = vsel %vm476, %v34, %v496
    %v513 = vsel %vm49, %v511, %v500
    %v514 = vsel %vm49, %v512, %v502
    %v515 = vsel %vm479, %v513, %v506
    %v516 = vsel %vm479, %v514, %v508
    %519 = vrot.lane.b32.xlu0 %v515, 64
    %v520 = vpop.permute.xlu0 %519
    %521 = vrot.lane.b32.xlu0 %v516, 64
    %v522 = vpop.permute.xlu0 %521
    %v525 = vadd.f32 %v489, %v520
    %v526 = vadd.f32 %v490, %v522
    %vm527 = vcmask 1048064
    %v528 = vsel %vm527, %v525, -inf
    %529 = vmax.xlane.f32.xlu0 %v528
    %v530 = vpop.xlane.xlu0 %529
    %v531 = vsel %vm527, %v526, -inf
    %532 = vmax.xlane.f32.xlu0 %v531
    %v533 = vpop.xlane.xlu0 %532
    %v534 = vsub.f32 %v525, %v530
    %v535 = vsub.f32 %v526, %v533
    %v536 = vmul.f32 %v534, 1.442695
    %v537 = vpow.pop %v536
    %v538 = vmul.f32 %v535, 1.442695
    %v539 = vpow.pop %v538
    %542 = vrot.lane.b32.xlu0 %v537, 64
    %v543 = vpop.permute.xlu0 %542
    %544 = vrot.lane.b32.xlu0 %v539, 64
    %v545 = vpop.permute.xlu0 %544
    %vm546 = vcmask 523264
    %v547 = vsel %vm546, %v543, 0
    %v549 = vsel %vm546, %v545, 0
    %551 = vmatpush.msra.mxu0 0.0
    %552 = vmatpush.msra.mxu0 0.0
    %553 = vmatpush.msra.mxu0 0.0
    %554 = vmatpush.msra.mxu0 0.0
    %555 = vmatpush.msra.mxu0 0.0
    %556 = vmatpush.msra.mxu0 0.0
    %557 = vmatpush.msra.mxu0 0.0
    %558 = vmatpush.msra.mxu0 0.0
    %v559 = vand.u32 %v47, 4294901760
    %560 = vmatpush.msra.mxu0 %v559
    %v561 = vand.u32 %v46, 4294901760
    %562 = vmatpush.msra.mxu0 %v561
    %v563 = vand.u32 %v45, 4294901760
    %564 = vmatpush.msra.mxu0 %v563
    %v565 = vand.u32 %v44, 4294901760
    %566 = vmatpush.msra.mxu0 %v565
    %v567 = vand.u32 %v43, 4294901760
    %568 = vmatpush.msra.mxu0 %v567
    %v569 = vand.u32 %v42, 4294901760
    %570 = vmatpush.msra.mxu0 %v569
    %v571 = vand.u32 %v41, 4294901760
    %572 = vmatpush.msra.mxu0 %v571
    %v573 = vand.u32 %v40, 4294901760
    %574 = vmatpush.msra.mxu0 %v573
    %v575 = vand.u32 %v547, 4294901760
    %v576 = vsub.f32 %v547, %v575
    %v577 = vand.u32 %v576, 4294901760
    %v578 = vsub.f32 %v576, %v577
    %v579 = vand.u32 %v578, 4294901760
    %580 = vmatmul.f32.gmra.mxu0 %v579
    %v581 = vpop.f32.mrf.mxu0
    %v582 = vadd.f32 0.0, %v581
    %v583 = vand.u32 %v549, 4294901760
    %v584 = vsub.f32 %v549, %v583
    %v585 = vand.u32 %v584, 4294901760
    %v586 = vsub.f32 %v584, %v585
    %v587 = vand.u32 %v586, 4294901760
    %588 = vmatmul.f32.gmra.mxu0 %v587
    %v589 = vpop.f32.mrf.mxu0
    %v590 = vadd.f32 0.0, %v589
    %591 = vdwg.mxu0
    %592 = vmatpush.msra.mxu0 0.0
    %593 = vmatpush.msra.mxu0 0.0
    %594 = vmatpush.msra.mxu0 0.0
    %595 = vmatpush.msra.mxu0 0.0
    %596 = vmatpush.msra.mxu0 0.0
    %597 = vmatpush.msra.mxu0 0.0
    %598 = vmatpush.msra.mxu0 0.0
    %599 = vmatpush.msra.mxu0 0.0
    %v600 = vand.u32 %v47, 4294901760
    %v601 = vsub.f32 %v47, %v600
    %v602 = vand.u32 %v601, 4294901760
    %v603 = vsub.f32 %v601, %v602
    %v604 = vand.u32 %v603, 4294901760
    %605 = vmatpush.msra.mxu0 %v604
    %v606 = vand.u32 %v46, 4294901760
    %v607 = vsub.f32 %v46, %v606
    %v608 = vand.u32 %v607, 4294901760
    %v609 = vsub.f32 %v607, %v608
    %v610 = vand.u32 %v609, 4294901760
    %611 = vmatpush.msra.mxu0 %v610
    %v612 = vand.u32 %v45, 4294901760
    %v613 = vsub.f32 %v45, %v612
    %v614 = vand.u32 %v613, 4294901760
    %v615 = vsub.f32 %v613, %v614
    %v616 = vand.u32 %v615, 4294901760
    %617 = vmatpush.msra.mxu0 %v616
    %v618 = vand.u32 %v44, 4294901760
    %v619 = vsub.f32 %v44, %v618
    %v620 = vand.u32 %v619, 4294901760
    %v621 = vsub.f32 %v619, %v620
    %v622 = vand.u32 %v621, 4294901760
    %623 = vmatpush.msra.mxu0 %v622
    %v624 = vand.u32 %v43, 4294901760
    %v625 = vsub.f32 %v43, %v624
    %v626 = vand.u32 %v625, 4294901760
    %v627 = vsub.f32 %v625, %v626
    %v628 = vand.u32 %v627, 4294901760
    %629 = vmatpush.msra.mxu0 %v628
    %v630 = vand.u32 %v42, 4294901760
    %v631 = vsub.f32 %v42, %v630
    %v632 = vand.u32 %v631, 4294901760
    %v633 = vsub.f32 %v631, %v632
    %v634 = vand.u32 %v633, 4294901760
    %635 = vmatpush.msra.mxu0 %v634
    %v636 = vand.u32 %v41, 4294901760
    %v637 = vsub.f32 %v41, %v636
    %v638 = vand.u32 %v637, 4294901760
    %v639 = vsub.f32 %v637, %v638
    %v640 = vand.u32 %v639, 4294901760
    %641 = vmatpush.msra.mxu0 %v640
    %v642 = vand.u32 %v40, 4294901760
    %v643 = vsub.f32 %v40, %v642
    %v644 = vand.u32 %v643, 4294901760
    %v645 = vsub.f32 %v643, %v644
    %v646 = vand.u32 %v645, 4294901760
    %647 = vmatpush.msra.mxu0 %v646
    %v648 = vand.u32 %v547, 4294901760
    %649 = vmatmul.f32.gmra.mxu0 %v648
    %v650 = vpop.f32.mrf.mxu0
    %v651 = vadd.f32 %v582, %v650
    %v652 = vand.u32 %v549, 4294901760
    %653 = vmatmul.f32.gmra.mxu0 %v652
    %v654 = vpop.f32.mrf.mxu0
    %v655 = vadd.f32 %v590, %v654
    %656 = vdwg.mxu0
    %657 = vmatpush.msra.mxu0 0.0
    %658 = vmatpush.msra.mxu0 0.0
    %659 = vmatpush.msra.mxu0 0.0
    %660 = vmatpush.msra.mxu0 0.0
    %661 = vmatpush.msra.mxu0 0.0
    %662 = vmatpush.msra.mxu0 0.0
    %663 = vmatpush.msra.mxu0 0.0
    %664 = vmatpush.msra.mxu0 0.0
    %v665 = vand.u32 %v47, 4294901760
    %v666 = vsub.f32 %v47, %v665
    %667 = vmatpush.msra.mxu0 %v666
    %v668 = vand.u32 %v46, 4294901760
    %v669 = vsub.f32 %v46, %v668
    %670 = vmatpush.msra.mxu0 %v669
    %v671 = vand.u32 %v45, 4294901760
    %v672 = vsub.f32 %v45, %v671
    %673 = vmatpush.msra.mxu0 %v672
    %v674 = vand.u32 %v44, 4294901760
    %v675 = vsub.f32 %v44, %v674
    %676 = vmatpush.msra.mxu0 %v675
    %v677 = vand.u32 %v43, 4294901760
    %v678 = vsub.f32 %v43, %v677
    %679 = vmatpush.msra.mxu0 %v678
    %v680 = vand.u32 %v42, 4294901760
    %v681 = vsub.f32 %v42, %v680
    %682 = vmatpush.msra.mxu0 %v681
    %v683 = vand.u32 %v41, 4294901760
    %v684 = vsub.f32 %v41, %v683
    %685 = vmatpush.msra.mxu0 %v684
    %v686 = vand.u32 %v40, 4294901760
    %v687 = vsub.f32 %v40, %v686
    %688 = vmatpush.msra.mxu0 %v687
    %v689 = vand.u32 %v547, 4294901760
    %v690 = vsub.f32 %v547, %v689
    %691 = vmatmul.f32.gmra.mxu0 %v690
    %v692 = vpop.f32.mrf.mxu0
    %v693 = vadd.f32 %v651, %v692
    %v694 = vand.u32 %v549, 4294901760
    %v695 = vsub.f32 %v549, %v694
    %696 = vmatmul.f32.gmra.mxu0 %v695
    %v697 = vpop.f32.mrf.mxu0
    %v698 = vadd.f32 %v655, %v697
    %699 = vdwg.mxu0
    %700 = vmatpush.msra.mxu0 0.0
    %701 = vmatpush.msra.mxu0 0.0
    %702 = vmatpush.msra.mxu0 0.0
    %703 = vmatpush.msra.mxu0 0.0
    %704 = vmatpush.msra.mxu0 0.0
    %705 = vmatpush.msra.mxu0 0.0
    %706 = vmatpush.msra.mxu0 0.0
    %707 = vmatpush.msra.mxu0 0.0
    %v708 = vand.u32 %v47, 4294901760
    %709 = vmatpush.msra.mxu0 %v708
    %v710 = vand.u32 %v46, 4294901760
    %711 = vmatpush.msra.mxu0 %v710
    %v712 = vand.u32 %v45, 4294901760
    %713 = vmatpush.msra.mxu0 %v712
    %v714 = vand.u32 %v44, 4294901760
    %715 = vmatpush.msra.mxu0 %v714
    %v716 = vand.u32 %v43, 4294901760
    %717 = vmatpush.msra.mxu0 %v716
    %v718 = vand.u32 %v42, 4294901760
    %719 = vmatpush.msra.mxu0 %v718
    %v720 = vand.u32 %v41, 4294901760
    %721 = vmatpush.msra.mxu0 %v720
    %v722 = vand.u32 %v40, 4294901760
    %723 = vmatpush.msra.mxu0 %v722
    %v724 = vand.u32 %v547, 4294901760
    %v725 = vsub.f32 %v547, %v724
    %v726 = vand.u32 %v725, 4294901760
    %727 = vmatmul.f32.gmra.mxu0 %v726
    %v728 = vpop.f32.mrf.mxu0
    %v729 = vadd.f32 %v693, %v728
    %v730 = vand.u32 %v549, 4294901760
    %v731 = vsub.f32 %v549, %v730
    %v732 = vand.u32 %v731, 4294901760
    %733 = vmatmul.f32.gmra.mxu0 %v732
    %v734 = vpop.f32.mrf.mxu0
    %v735 = vadd.f32 %v698, %v734
    %736 = vdwg.mxu0
    %737 = vmatpush.msra.mxu0 0.0
    %738 = vmatpush.msra.mxu0 0.0
    %739 = vmatpush.msra.mxu0 0.0
    %740 = vmatpush.msra.mxu0 0.0
    %741 = vmatpush.msra.mxu0 0.0
    %742 = vmatpush.msra.mxu0 0.0
    %743 = vmatpush.msra.mxu0 0.0
    %744 = vmatpush.msra.mxu0 0.0
    %v745 = vand.u32 %v47, 4294901760
    %v746 = vsub.f32 %v47, %v745
    %v747 = vand.u32 %v746, 4294901760
    %748 = vmatpush.msra.mxu0 %v747
    %v749 = vand.u32 %v46, 4294901760
    %v750 = vsub.f32 %v46, %v749
    %v751 = vand.u32 %v750, 4294901760
    %752 = vmatpush.msra.mxu0 %v751
    %v753 = vand.u32 %v45, 4294901760
    %v754 = vsub.f32 %v45, %v753
    %v755 = vand.u32 %v754, 4294901760
    %756 = vmatpush.msra.mxu0 %v755
    %v757 = vand.u32 %v44, 4294901760
    %v758 = vsub.f32 %v44, %v757
    %v759 = vand.u32 %v758, 4294901760
    %760 = vmatpush.msra.mxu0 %v759
    %v761 = vand.u32 %v43, 4294901760
    %v762 = vsub.f32 %v43, %v761
    %v763 = vand.u32 %v762, 4294901760
    %764 = vmatpush.msra.mxu0 %v763
    %v765 = vand.u32 %v42, 4294901760
    %v766 = vsub.f32 %v42, %v765
    %v767 = vand.u32 %v766, 4294901760
    %768 = vmatpush.msra.mxu0 %v767
    %v769 = vand.u32 %v41, 4294901760
    %v770 = vsub.f32 %v41, %v769
    %v771 = vand.u32 %v770, 4294901760
    %772 = vmatpush.msra.mxu0 %v771
    %v773 = vand.u32 %v40, 4294901760
    %v774 = vsub.f32 %v40, %v773
    %v775 = vand.u32 %v774, 4294901760
    %776 = vmatpush.msra.mxu0 %v775
    %v777 = vand.u32 %v547, 4294901760
    %778 = vmatmul.f32.gmra.mxu0 %v777
    %v779 = vpop.f32.mrf.mxu0
    %v780 = vadd.f32 %v729, %v779
    %v781 = vand.u32 %v549, 4294901760
    %782 = vmatmul.f32.gmra.mxu0 %v781
    %v783 = vpop.f32.mrf.mxu0
    %v784 = vadd.f32 %v735, %v783
    %785 = vdwg.mxu0
    %786 = vmatpush.msra.mxu0 0.0
    %787 = vmatpush.msra.mxu0 0.0
    %788 = vmatpush.msra.mxu0 0.0
    %789 = vmatpush.msra.mxu0 0.0
    %790 = vmatpush.msra.mxu0 0.0
    %791 = vmatpush.msra.mxu0 0.0
    %792 = vmatpush.msra.mxu0 0.0
    %793 = vmatpush.msra.mxu0 0.0
    %v794 = vand.u32 %v47, 4294901760
    %795 = vmatpush.msra.mxu0 %v794
    %v796 = vand.u32 %v46, 4294901760
    %797 = vmatpush.msra.mxu0 %v796
    %v798 = vand.u32 %v45, 4294901760
    %799 = vmatpush.msra.mxu0 %v798
    %v800 = vand.u32 %v44, 4294901760
    %801 = vmatpush.msra.mxu0 %v800
    %v802 = vand.u32 %v43, 4294901760
    %803 = vmatpush.msra.mxu0 %v802
    %v804 = vand.u32 %v42, 4294901760
    %805 = vmatpush.msra.mxu0 %v804
    %v806 = vand.u32 %v41, 4294901760
    %807 = vmatpush.msra.mxu0 %v806
    %v808 = vand.u32 %v40, 4294901760
    %809 = vmatpush.msra.mxu0 %v808
    %v810 = vand.u32 %v547, 4294901760
    %811 = vmatmul.f32.gmra.mxu0 %v810
    %v812 = vpop.f32.mrf.mxu0
    %v813 = vadd.f32 %v780, %v812
    %v814 = vand.u32 %v549, 4294901760
    %815 = vmatmul.f32.gmra.mxu0 %v814
    %v816 = vpop.f32.mrf.mxu0
    %v817 = vadd.f32 %v784, %v816
    %818 = vdwg.mxu0
    %v819 = vrcp.pop %v813
    %v820 = vmul.f32 %v813, %v819
    %v821 = vsub.f32 1.0, %v820
    %v822 = vmul.f32 %v819, %v821
    %v823 = vadd.f32 %v819, %v822
    %vm824 = vweird.f32 %v813
    %vm825 = vweird.f32 %v819
    %vm826 = vmor %vm824, %vm825
    %v827 = vsel %vm826, %v819, %v823
    %v828 = vand.u32 2147483647, %v813
    %vm829 = vcmp.eq.f32.partialorder %v828, 8.507059e+37
    %v830 = vand.u32 %v813, 2147483648
    %v831 = vor.u32 1.1754944e-38, %v830
    %v832 = vsel %vm829, %v831, %v827
    %v833 = vmul.f32 1.0, %v832
    %v834 = vrcp.pop %v817
    %v835 = vmul.f32 %v817, %v834
    %v836 = vsub.f32 1.0, %v835
    %v837 = vmul.f32 %v834, %v836
    %v838 = vadd.f32 %v834, %v837
    %vm839 = vweird.f32 %v817
    %vm840 = vweird.f32 %v834
    %vm841 = vmor %vm839, %vm840
    %v842 = vsel %vm841, %v834, %v838
    %v843 = vand.u32 2147483647, %v817
    %vm844 = vcmp.eq.f32.partialorder %v843, 8.507059e+37
    %v845 = vand.u32 %v817, 2147483648
    %v846 = vor.u32 1.1754944e-38, %v845
    %v847 = vsel %vm844, %v846, %v842
    %v848 = vmul.f32 1.0, %v847
    %v849 = vperm.slane %v48, 0
    %v850 = vmul.f32 %v266, %v849
    %v851 = vmul.f32 %v270, %v849
    %v852 = vperm.slane %v48, 1
    %v853 = vmul.f32 %v266, %v852
    %v854 = vmul.f32 %v270, %v852
    %v855 = vperm.slane %v48, 2
    %v856 = vmul.f32 %v266, %v855
    %v857 = vmul.f32 %v270, %v855
    %v858 = vperm.slane %v48, 3
    %v859 = vmul.f32 %v266, %v858
    %v860 = vmul.f32 %v270, %v858
    %861 = vmatpush.msra.mxu0 0.0
    %862 = vmatpush.msra.mxu0 0.0
    %863 = vmatpush.msra.mxu0 0.0
    %864 = vmatpush.msra.mxu0 0.0
    %865 = vmatpush.msra.mxu0 0.0
    %866 = vmatpush.msra.mxu0 0.0
    %867 = vmatpush.msra.mxu0 0.0
    %868 = vmatpush.msra.mxu0 0.0
    %v869 = vand.u32 %v860, 4294901760
    %870 = vmatpush.msra.mxu0 %v869
    %v871 = vand.u32 %v859, 4294901760
    %872 = vmatpush.msra.mxu0 %v871
    %v873 = vand.u32 %v857, 4294901760
    %874 = vmatpush.msra.mxu0 %v873
    %v875 = vand.u32 %v856, 4294901760
    %876 = vmatpush.msra.mxu0 %v875
    %v877 = vand.u32 %v854, 4294901760
    %878 = vmatpush.msra.mxu0 %v877
    %v879 = vand.u32 %v853, 4294901760
    %880 = vmatpush.msra.mxu0 %v879
    %v881 = vand.u32 %v851, 4294901760
    %882 = vmatpush.msra.mxu0 %v881
    %v883 = vand.u32 %v850, 4294901760
    %884 = vmatpush.msra.mxu0 %v883
    %v885 = vand.u32 %v547, 4294901760
    %v886 = vsub.f32 %v547, %v885
    %v887 = vand.u32 %v886, 4294901760
    %v888 = vsub.f32 %v886, %v887
    %v889 = vand.u32 %v888, 4294901760
    %890 = vmatmul.f32.gmra.mxu0 %v889
    %v891 = vpop.f32.mrf.mxu0
    %v892 = vadd.f32 0.0, %v891
    %v893 = vand.u32 %v549, 4294901760
    %v894 = vsub.f32 %v549, %v893
    %v895 = vand.u32 %v894, 4294901760
    %v896 = vsub.f32 %v894, %v895
    %v897 = vand.u32 %v896, 4294901760
    %898 = vmatmul.f32.gmra.mxu0 %v897
    %v899 = vpop.f32.mrf.mxu0
    %v900 = vadd.f32 0.0, %v899
    %901 = vdwg.mxu0
    %902 = vmatpush.msra.mxu0 0.0
    %903 = vmatpush.msra.mxu0 0.0
    %904 = vmatpush.msra.mxu0 0.0
    %905 = vmatpush.msra.mxu0 0.0
    %906 = vmatpush.msra.mxu0 0.0
    %907 = vmatpush.msra.mxu0 0.0
    %908 = vmatpush.msra.mxu0 0.0
    %909 = vmatpush.msra.mxu0 0.0
    %v910 = vand.u32 %v860, 4294901760
    %v911 = vsub.f32 %v860, %v910
    %v912 = vand.u32 %v911, 4294901760
    %v913 = vsub.f32 %v911, %v912
    %v914 = vand.u32 %v913, 4294901760
    %915 = vmatpush.msra.mxu0 %v914
    %v916 = vand.u32 %v859, 4294901760
    %v917 = vsub.f32 %v859, %v916
    %v918 = vand.u32 %v917, 4294901760
    %v919 = vsub.f32 %v917, %v918
    %v920 = vand.u32 %v919, 4294901760
    %921 = vmatpush.msra.mxu0 %v920
    %v922 = vand.u32 %v857, 4294901760
    %v923 = vsub.f32 %v857, %v922
    %v924 = vand.u32 %v923, 4294901760
    %v925 = vsub.f32 %v923, %v924
    %v926 = vand.u32 %v925, 4294901760
    %927 = vmatpush.msra.mxu0 %v926
    %v928 = vand.u32 %v856, 4294901760
    %v929 = vsub.f32 %v856, %v928
    %v930 = vand.u32 %v929, 4294901760
    %v931 = vsub.f32 %v929, %v930
    %v932 = vand.u32 %v931, 4294901760
    %933 = vmatpush.msra.mxu0 %v932
    %v934 = vand.u32 %v854, 4294901760
    %v935 = vsub.f32 %v854, %v934
    %v936 = vand.u32 %v935, 4294901760
    %v937 = vsub.f32 %v935, %v936
    %v938 = vand.u32 %v937, 4294901760
    %939 = vmatpush.msra.mxu0 %v938
    %v940 = vand.u32 %v853, 4294901760
    %v941 = vsub.f32 %v853, %v940
    %v942 = vand.u32 %v941, 4294901760
    %v943 = vsub.f32 %v941, %v942
    %v944 = vand.u32 %v943, 4294901760
    %945 = vmatpush.msra.mxu0 %v944
    %v946 = vand.u32 %v851, 4294901760
    %v947 = vsub.f32 %v851, %v946
    %v948 = vand.u32 %v947, 4294901760
    %v949 = vsub.f32 %v947, %v948
    %v950 = vand.u32 %v949, 4294901760
    %951 = vmatpush.msra.mxu0 %v950
    %v952 = vand.u32 %v850, 4294901760
    %v953 = vsub.f32 %v850, %v952
    %v954 = vand.u32 %v953, 4294901760
    %v955 = vsub.f32 %v953, %v954
    %v956 = vand.u32 %v955, 4294901760
    %957 = vmatpush.msra.mxu0 %v956
    %v958 = vand.u32 %v547, 4294901760
    %959 = vmatmul.f32.gmra.mxu0 %v958
    %v960 = vpop.f32.mrf.mxu0
    %v961 = vadd.f32 %v892, %v960
    %v962 = vand.u32 %v549, 4294901760
    %963 = vmatmul.f32.gmra.mxu0 %v962
    %v964 = vpop.f32.mrf.mxu0
    %v965 = vadd.f32 %v900, %v964
    %966 = vdwg.mxu0
    %967 = vmatpush.msra.mxu0 0.0
    %968 = vmatpush.msra.mxu0 0.0
    %969 = vmatpush.msra.mxu0 0.0
    %970 = vmatpush.msra.mxu0 0.0
    %971 = vmatpush.msra.mxu0 0.0
    %972 = vmatpush.msra.mxu0 0.0
    %973 = vmatpush.msra.mxu0 0.0
    %974 = vmatpush.msra.mxu0 0.0
    %v975 = vand.u32 %v860, 4294901760
    %v976 = vsub.f32 %v860, %v975
    %977 = vmatpush.msra.mxu0 %v976
    %v978 = vand.u32 %v859, 4294901760
    %v979 = vsub.f32 %v859, %v978
    %980 = vmatpush.msra.mxu0 %v979
    %v981 = vand.u32 %v857, 4294901760
    %v982 = vsub.f32 %v857, %v981
    %983 = vmatpush.msra.mxu0 %v982
    %v984 = vand.u32 %v856, 4294901760
    %v985 = vsub.f32 %v856, %v984
    %986 = vmatpush.msra.mxu0 %v985
    %v987 = vand.u32 %v854, 4294901760
    %v988 = vsub.f32 %v854, %v987
    %989 = vmatpush.msra.mxu0 %v988
    %v990 = vand.u32 %v853, 4294901760
    %v991 = vsub.f32 %v853, %v990
    %992 = vmatpush.msra.mxu0 %v991
    %v993 = vand.u32 %v851, 4294901760
    %v994 = vsub.f32 %v851, %v993
    %995 = vmatpush.msra.mxu0 %v994
    %v996 = vand.u32 %v850, 4294901760
    %v997 = vsub.f32 %v850, %v996
    %998 = vmatpush.msra.mxu0 %v997
    %v999 = vand.u32 %v547, 4294901760
    %v1000 = vsub.f32 %v547, %v999
    %1001 = vmatmul.f32.gmra.mxu0 %v1000
    %v1002 = vpop.f32.mrf.mxu0
    %v1003 = vadd.f32 %v961, %v1002
    %v1004 = vand.u32 %v549, 4294901760
    %v1005 = vsub.f32 %v549, %v1004
    %1006 = vmatmul.f32.gmra.mxu0 %v1005
    %v1007 = vpop.f32.mrf.mxu0
    %v1008 = vadd.f32 %v965, %v1007
    %1009 = vdwg.mxu0
    %1010 = vmatpush.msra.mxu0 0.0
    %1011 = vmatpush.msra.mxu0 0.0
    %1012 = vmatpush.msra.mxu0 0.0
    %1013 = vmatpush.msra.mxu0 0.0
    %1014 = vmatpush.msra.mxu0 0.0
    %1015 = vmatpush.msra.mxu0 0.0
    %1016 = vmatpush.msra.mxu0 0.0
    %1017 = vmatpush.msra.mxu0 0.0
    %v1018 = vand.u32 %v860, 4294901760
    %1019 = vmatpush.msra.mxu0 %v1018
    %v1020 = vand.u32 %v859, 4294901760
    %1021 = vmatpush.msra.mxu0 %v1020
    %v1022 = vand.u32 %v857, 4294901760
    %1023 = vmatpush.msra.mxu0 %v1022
    %v1024 = vand.u32 %v856, 4294901760
    %1025 = vmatpush.msra.mxu0 %v1024
    %v1026 = vand.u32 %v854, 4294901760
    %1027 = vmatpush.msra.mxu0 %v1026
    %v1028 = vand.u32 %v853, 4294901760
    %1029 = vmatpush.msra.mxu0 %v1028
    %v1030 = vand.u32 %v851, 4294901760
    %1031 = vmatpush.msra.mxu0 %v1030
    %v1032 = vand.u32 %v850, 4294901760
    %1033 = vmatpush.msra.mxu0 %v1032
    %v1034 = vand.u32 %v547, 4294901760
    %v1035 = vsub.f32 %v547, %v1034
    %v1036 = vand.u32 %v1035, 4294901760
    %1037 = vmatmul.f32.gmra.mxu0 %v1036
    %v1038 = vpop.f32.mrf.mxu0
    %v1039 = vadd.f32 %v1003, %v1038
    %v1040 = vand.u32 %v549, 4294901760
    %v1041 = vsub.f32 %v549, %v1040
    %v1042 = vand.u32 %v1041, 4294901760
    %1043 = vmatmul.f32.gmra.mxu0 %v1042
    %v1044 = vpop.f32.mrf.mxu0
    %v1045 = vadd.f32 %v1008, %v1044
    %1046 = vdwg.mxu0
    %1047 = vmatpush.msra.mxu0 0.0
    %1048 = vmatpush.msra.mxu0 0.0
    %1049 = vmatpush.msra.mxu0 0.0
    %1050 = vmatpush.msra.mxu0 0.0
    %1051 = vmatpush.msra.mxu0 0.0
    %1052 = vmatpush.msra.mxu0 0.0
    %1053 = vmatpush.msra.mxu0 0.0
    %1054 = vmatpush.msra.mxu0 0.0
    %v1055 = vand.u32 %v860, 4294901760
    %v1056 = vsub.f32 %v860, %v1055
    %v1057 = vand.u32 %v1056, 4294901760
    %1058 = vmatpush.msra.mxu0 %v1057
    %v1059 = vand.u32 %v859, 4294901760
    %v1060 = vsub.f32 %v859, %v1059
    %v1061 = vand.u32 %v1060, 4294901760
    %1062 = vmatpush.msra.mxu0 %v1061
    %v1063 = vand.u32 %v857, 4294901760
    %v1064 = vsub.f32 %v857, %v1063
    %v1065 = vand.u32 %v1064, 4294901760
    %1066 = vmatpush.msra.mxu0 %v1065
    %v1067 = vand.u32 %v856, 4294901760
    %v1068 = vsub.f32 %v856, %v1067
    %v1069 = vand.u32 %v1068, 4294901760
    %1070 = vmatpush.msra.mxu0 %v1069
    %v1071 = vand.u32 %v854, 4294901760
    %v1072 = vsub.f32 %v854, %v1071
    %v1073 = vand.u32 %v1072, 4294901760
    %1074 = vmatpush.msra.mxu0 %v1073
    %v1075 = vand.u32 %v853, 4294901760
    %v1076 = vsub.f32 %v853, %v1075
    %v1077 = vand.u32 %v1076, 4294901760
    %1078 = vmatpush.msra.mxu0 %v1077
    %v1079 = vand.u32 %v851, 4294901760
    %v1080 = vsub.f32 %v851, %v1079
    %v1081 = vand.u32 %v1080, 4294901760
    %1082 = vmatpush.msra.mxu0 %v1081
    %v1083 = vand.u32 %v850, 4294901760
    %v1084 = vsub.f32 %v850, %v1083
    %v1085 = vand.u32 %v1084, 4294901760
    %1086 = vmatpush.msra.mxu0 %v1085
    %v1087 = vand.u32 %v547, 4294901760
    %1088 = vmatmul.f32.gmra.mxu0 %v1087
    %v1089 = vpop.f32.mrf.mxu0
    %v1090 = vadd.f32 %v1039, %v1089
    %v1091 = vand.u32 %v549, 4294901760
    %1092 = vmatmul.f32.gmra.mxu0 %v1091
    %v1093 = vpop.f32.mrf.mxu0
    %v1094 = vadd.f32 %v1045, %v1093
    %1095 = vdwg.mxu0
    %1096 = vmatpush.msra.mxu0 0.0
    %1097 = vmatpush.msra.mxu0 0.0
    %1098 = vmatpush.msra.mxu0 0.0
    %1099 = vmatpush.msra.mxu0 0.0
    %1100 = vmatpush.msra.mxu0 0.0
    %1101 = vmatpush.msra.mxu0 0.0
    %1102 = vmatpush.msra.mxu0 0.0
    %1103 = vmatpush.msra.mxu0 0.0
    %v1104 = vand.u32 %v860, 4294901760
    %1105 = vmatpush.msra.mxu0 %v1104
    %v1106 = vand.u32 %v859, 4294901760
    %1107 = vmatpush.msra.mxu0 %v1106
    %v1108 = vand.u32 %v857, 4294901760
    %1109 = vmatpush.msra.mxu0 %v1108
    %v1110 = vand.u32 %v856, 4294901760
    %1111 = vmatpush.msra.mxu0 %v1110
    %v1112 = vand.u32 %v854, 4294901760
    %1113 = vmatpush.msra.mxu0 %v1112
    %v1114 = vand.u32 %v853, 4294901760
    %1115 = vmatpush.msra.mxu0 %v1114
    %v1116 = vand.u32 %v851, 4294901760
    %1117 = vmatpush.msra.mxu0 %v1116
    %v1118 = vand.u32 %v850, 4294901760
    %1119 = vmatpush.msra.mxu0 %v1118
    %v1120 = vand.u32 %v547, 4294901760
    %1121 = vmatmul.f32.gmra.mxu0 %v1120
    %v1122 = vpop.f32.mrf.mxu0
    %v1123 = vadd.f32 %v1090, %v1122
    %v1124 = vand.u32 %v549, 4294901760
    %1125 = vmatmul.f32.gmra.mxu0 %v1124
    %v1126 = vpop.f32.mrf.mxu0
    %v1127 = vadd.f32 %v1094, %v1126
    %1128 = vdwg.mxu0
    %vm1129 = vcmask 31744
    %v1131 = vsel %vm1129, %v833, 0
    %v1134 = vsel %vm1129, %v848, 0
    %vm1136 = vcmask 1043456
    %v1138 = vsel %vm1136, %v48, 0
    %1140 = vmatpush.msra.mxu0 0.0
    %1141 = vmatpush.msra.mxu0 0.0
    %1142 = vmatpush.msra.mxu0 0.0
    %1143 = vmatpush.msra.mxu0 0.0
    %1144 = vmatpush.msra.mxu0 0.0
    %1145 = vmatpush.msra.mxu0 0.0
    %1146 = vmatpush.msra.mxu0 0.0
    %1147 = vmatpush.msra.mxu0 0.0
    %1148 = vmatpush.msra.mxu0 0.0
    %1149 = vmatpush.msra.mxu0 0.0
    %1150 = vmatpush.msra.mxu0 0.0
    %1151 = vmatpush.msra.mxu0 0.0
    %1152 = vmatpush.msra.mxu0 0.0
    %1153 = vmatpush.msra.mxu0 0.0
    %1154 = vmatpush.msra.mxu0 0.0
    %v1155 = vand.u32 %v1138, 4294901760
    %1156 = vmatpush.msra.mxu0 %v1155
    %v1157 = vand.u32 %v1131, 4294901760
    %v1158 = vsub.f32 %v1131, %v1157
    %v1159 = vand.u32 %v1158, 4294901760
    %v1160 = vsub.f32 %v1158, %v1159
    %v1161 = vand.u32 %v1160, 4294901760
    %1162 = vmatmul.f32.gmra.mxu0 %v1161
    %v1163 = vpop.f32.mrf.mxu0
    %v1164 = vadd.f32 0.0, %v1163
    %v1165 = vand.u32 %v1134, 4294901760
    %v1166 = vsub.f32 %v1134, %v1165
    %v1167 = vand.u32 %v1166, 4294901760
    %v1168 = vsub.f32 %v1166, %v1167
    %v1169 = vand.u32 %v1168, 4294901760
    %1170 = vmatmul.f32.gmra.mxu0 %v1169
    %v1171 = vpop.f32.mrf.mxu0
    %v1172 = vadd.f32 0.0, %v1171
    %1173 = vdwg.mxu0
    %1174 = vmatpush.msra.mxu0 0.0
    %1175 = vmatpush.msra.mxu0 0.0
    %1176 = vmatpush.msra.mxu0 0.0
    %1177 = vmatpush.msra.mxu0 0.0
    %1178 = vmatpush.msra.mxu0 0.0
    %1179 = vmatpush.msra.mxu0 0.0
    %1180 = vmatpush.msra.mxu0 0.0
    %1181 = vmatpush.msra.mxu0 0.0
    %1182 = vmatpush.msra.mxu0 0.0
    %1183 = vmatpush.msra.mxu0 0.0
    %1184 = vmatpush.msra.mxu0 0.0
    %1185 = vmatpush.msra.mxu0 0.0
    %1186 = vmatpush.msra.mxu0 0.0
    %1187 = vmatpush.msra.mxu0 0.0
    %1188 = vmatpush.msra.mxu0 0.0
    %v1189 = vand.u32 %v1138, 4294901760
    %v1190 = vsub.f32 %v1138, %v1189
    %v1191 = vand.u32 %v1190, 4294901760
    %v1192 = vsub.f32 %v1190, %v1191
    %v1193 = vand.u32 %v1192, 4294901760
    %1194 = vmatpush.msra.mxu0 %v1193
    %v1195 = vand.u32 %v1131, 4294901760
    %1196 = vmatmul.f32.gmra.mxu0 %v1195
    %v1197 = vpop.f32.mrf.mxu0
    %v1198 = vadd.f32 %v1164, %v1197
    %v1199 = vand.u32 %v1134, 4294901760
    %1200 = vmatmul.f32.gmra.mxu0 %v1199
    %v1201 = vpop.f32.mrf.mxu0
    %v1202 = vadd.f32 %v1172, %v1201
    %1203 = vdwg.mxu0
    %1204 = vmatpush.msra.mxu0 0.0
    %1205 = vmatpush.msra.mxu0 0.0
    %1206 = vmatpush.msra.mxu0 0.0
    %1207 = vmatpush.msra.mxu0 0.0
    %1208 = vmatpush.msra.mxu0 0.0
    %1209 = vmatpush.msra.mxu0 0.0
    %1210 = vmatpush.msra.mxu0 0.0
    %1211 = vmatpush.msra.mxu0 0.0
    %1212 = vmatpush.msra.mxu0 0.0
    %1213 = vmatpush.msra.mxu0 0.0
    %1214 = vmatpush.msra.mxu0 0.0
    %1215 = vmatpush.msra.mxu0 0.0
    %1216 = vmatpush.msra.mxu0 0.0
    %1217 = vmatpush.msra.mxu0 0.0
    %1218 = vmatpush.msra.mxu0 0.0
    %v1219 = vand.u32 %v1138, 4294901760
    %v1220 = vsub.f32 %v1138, %v1219
    %1221 = vmatpush.msra.mxu0 %v1220
    %v1222 = vand.u32 %v1131, 4294901760
    %v1223 = vsub.f32 %v1131, %v1222
    %1224 = vmatmul.f32.gmra.mxu0 %v1223
    %v1225 = vpop.f32.mrf.mxu0
    %v1226 = vadd.f32 %v1198, %v1225
    %v1227 = vand.u32 %v1134, 4294901760
    %v1228 = vsub.f32 %v1134, %v1227
    %1229 = vmatmul.f32.gmra.mxu0 %v1228
    %v1230 = vpop.f32.mrf.mxu0
    %v1231 = vadd.f32 %v1202, %v1230
    %1232 = vdwg.mxu0
    %1233 = vmatpush.msra.mxu0 0.0
    %1234 = vmatpush.msra.mxu0 0.0
    %1235 = vmatpush.msra.mxu0 0.0
    %1236 = vmatpush.msra.mxu0 0.0
    %1237 = vmatpush.msra.mxu0 0.0
    %1238 = vmatpush.msra.mxu0 0.0
    %1239 = vmatpush.msra.mxu0 0.0
    %1240 = vmatpush.msra.mxu0 0.0
    %1241 = vmatpush.msra.mxu0 0.0
    %1242 = vmatpush.msra.mxu0 0.0
    %1243 = vmatpush.msra.mxu0 0.0
    %1244 = vmatpush.msra.mxu0 0.0
    %1245 = vmatpush.msra.mxu0 0.0
    %1246 = vmatpush.msra.mxu0 0.0
    %1247 = vmatpush.msra.mxu0 0.0
    %v1248 = vand.u32 %v1138, 4294901760
    %1249 = vmatpush.msra.mxu0 %v1248
    %v1250 = vand.u32 %v1131, 4294901760
    %v1251 = vsub.f32 %v1131, %v1250
    %v1252 = vand.u32 %v1251, 4294901760
    %1253 = vmatmul.f32.gmra.mxu0 %v1252
    %v1254 = vpop.f32.mrf.mxu0
    %v1255 = vadd.f32 %v1226, %v1254
    %v1256 = vand.u32 %v1134, 4294901760
    %v1257 = vsub.f32 %v1134, %v1256
    %v1258 = vand.u32 %v1257, 4294901760
    %1259 = vmatmul.f32.gmra.mxu0 %v1258
    %v1260 = vpop.f32.mrf.mxu0
    %v1261 = vadd.f32 %v1231, %v1260
    %1262 = vdwg.mxu0
    %1263 = vmatpush.msra.mxu0 0.0
    %1264 = vmatpush.msra.mxu0 0.0
    %1265 = vmatpush.msra.mxu0 0.0
    %1266 = vmatpush.msra.mxu0 0.0
    %1267 = vmatpush.msra.mxu0 0.0
    %1268 = vmatpush.msra.mxu0 0.0
    %1269 = vmatpush.msra.mxu0 0.0
    %1270 = vmatpush.msra.mxu0 0.0
    %1271 = vmatpush.msra.mxu0 0.0
    %1272 = vmatpush.msra.mxu0 0.0
    %1273 = vmatpush.msra.mxu0 0.0
    %1274 = vmatpush.msra.mxu0 0.0
    %1275 = vmatpush.msra.mxu0 0.0
    %1276 = vmatpush.msra.mxu0 0.0
    %1277 = vmatpush.msra.mxu0 0.0
    %v1278 = vand.u32 %v1138, 4294901760
    %v1279 = vsub.f32 %v1138, %v1278
    %v1280 = vand.u32 %v1279, 4294901760
    %1281 = vmatpush.msra.mxu0 %v1280
    %v1282 = vand.u32 %v1131, 4294901760
    %1283 = vmatmul.f32.gmra.mxu0 %v1282
    %v1284 = vpop.f32.mrf.mxu0
    %v1285 = vadd.f32 %v1255, %v1284
    %v1286 = vand.u32 %v1134, 4294901760
    %1287 = vmatmul.f32.gmra.mxu0 %v1286
    %v1288 = vpop.f32.mrf.mxu0
    %v1289 = vadd.f32 %v1261, %v1288
    %1290 = vdwg.mxu0
    %1291 = vmatpush.msra.mxu0 0.0
    %1292 = vmatpush.msra.mxu0 0.0
    %1293 = vmatpush.msra.mxu0 0.0
    %1294 = vmatpush.msra.mxu0 0.0
    %1295 = vmatpush.msra.mxu0 0.0
    %1296 = vmatpush.msra.mxu0 0.0
    %1297 = vmatpush.msra.mxu0 0.0
    %1298 = vmatpush.msra.mxu0 0.0
    %1299 = vmatpush.msra.mxu0 0.0
    %1300 = vmatpush.msra.mxu0 0.0
    %1301 = vmatpush.msra.mxu0 0.0
    %1302 = vmatpush.msra.mxu0 0.0
    %1303 = vmatpush.msra.mxu0 0.0
    %1304 = vmatpush.msra.mxu0 0.0
    %1305 = vmatpush.msra.mxu0 0.0
    %v1306 = vand.u32 %v1138, 4294901760
    %1307 = vmatpush.msra.mxu0 %v1306
    %v1308 = vand.u32 %v1131, 4294901760
    %1309 = vmatmul.f32.gmra.mxu0 %v1308
    %v1310 = vpop.f32.mrf.mxu0
    %v1311 = vadd.f32 %v1285, %v1310
    %v1312 = vand.u32 %v1134, 4294901760
    %1313 = vmatmul.f32.gmra.mxu0 %v1312
    %v1314 = vpop.f32.mrf.mxu0
    %v1315 = vadd.f32 %v1289, %v1314
    %1316 = vdwg.mxu0
    %v1317 = vmul.f32 %v1123, %v1311
    %v1318 = vmul.f32 %v1127, %v1315
    %vm1319 = vcmp.gt.f32.partialorder %v1317, 0.0
    %vm1320 = vcmp.gt.f32.partialorder %v1318, 0.0
    %v1321 = vmin.f32 %v1317, 0.0
    %v1322 = vmin.f32 %v1318, 0.0
    %v1323 = vmul.f32 %v1321, 1.442695
    %v1324 = vpow.pop %v1323
    %v1325 = vmul.f32 %v1322, 1.442695
    %v1326 = vpow.pop %v1325
    %v1327 = vsub.f32 %v1324, 1.0
    %v1328 = vsub.f32 %v1326, 1.0
    %v1329 = vsel %vm1319, %v1317, %v1327
    %v1330 = vsel %vm1320, %v1318, %v1328
    %v1331 = vsel %vm546, %v1329, 0.0
    %v1332 = vsel %vm546, %v1330, 0.0
    %1333 = vst [vmem:[#allocation2] sm:$0xff] %v1331
    %1334 = vst [vmem:[#allocation2 + $0x8] sm:$0xff] %v1332
    // Predicated region
    $region30: #{tpu_custom_call.1} parent=1 // pred_check
      _
    $region31: #{tpu_custom_call.1} parent=1 // pred_check_branch
      %1336 = sbr.rel (0) target = $region33
    $region32: #{tpu_custom_call.1} parent=1 // pred_region
      %1338 = vsyncadd [#allocation3], 0
      %s1339 = sshll.u32 [#allocation2], 4
      %s1340 = int_to_ptr.vmem [resolvable:$true] %s1339
      %s1341 = sshll.u32 %s7, 4
      %s1342 = int_to_ptr.hbm [resolvable:$true] %s1341
      %1347 = dma.vmem_to_hbm [thread:$0]  %s1340, 256, %s1342, [#allocation3], 128, 128, 8
    $region33: #{tpu_custom_call.1} parent=1 // pred_fallthru
      _
    // Predicated region
    $region34: #{tpu_custom_call.1} parent=1 // pred_check
      _
    $region35: #{tpu_custom_call.1} parent=1 // pred_check_branch
      %1349 = sbr.rel (0) target = $region37
    $region36: #{tpu_custom_call.1} parent=1 // pred_region
      %1351 = dma.done [#allocation3], 256
    $region37: #{tpu_custom_call.1} parent=1 // pred_fallthru
      _
    %1352 = vsyncpa [#allocation3], 1

</llo_original>
